<compile_context>
chip_gen: v7x
topology: tpu7x:2x2x1
jax: 0.10.0
libtpu: 0.0.40
codegen_flags: <defaults>
</compile_context>

<pallas_src>
import jax
import jax.numpy as jnp
from jax.experimental import pallas as pl
from jax.experimental.pallas import tpu as pltpu


def actor_critic_kernel(
    state_ref,
    f1_w_ref, f1_b_ref,
    f2_w_ref, f2_b_ref,
    h1_w_ref, h1_b_ref,   # fused head layer 1:  [p1 | v1]      -> [H, 2H]
    h2_w_ref, h2_b_ref,   # fused head layer 2:  blkdiag(p2,v2) -> [2H, OUT_PAD]
    out_ref,              # [TB, OUT_PAD] = [logits | value | zero-pad]
):
    x = state_ref[...]

    # MXU inputs follow the weight dtype (f32 or bf16); accumulation is f32.
    def matmul(a, w_ref):
        return jnp.dot(a.astype(w_ref.dtype), w_ref[...],
                       preferred_element_type=jnp.float32)

    # Feature trunk: Linear -> ReLU -> Linear -> ReLU  (biases / ReLU in f32 on VPU)
    h = jnp.maximum(matmul(x, f1_w_ref) + f1_b_ref[...], 0.0)
    feats = jnp.maximum(matmul(h, f2_w_ref) + f2_b_ref[...], 0.0)

    # Fused heads: one [H,2H] matmul for both first layers, ReLU, then one
    # block-diagonal [2H,OUT_PAD] matmul yielding [logits | value | pad] in a
    # single lane-dense store.
    z = jnp.maximum(matmul(feats, h1_w_ref) + h1_b_ref[...], 0.0)
    out = matmul(z, h2_w_ref) + h2_b_ref[...]

    out_ref[...] = out.astype(out_ref.dtype)


def _fuse_params(params, action_dim, out_width, compute_dtype):
    """Build fused head weights. Matmul weights cast to compute_dtype, biases f32."""
    H = params["f2_w"].shape[0]

    h1_w = jnp.concatenate([params["p1_w"], params["v1_w"]], axis=1)   # [H, 2H]
    h1_b = jnp.concatenate([params["p1_b"], params["v1_b"]], axis=1)   # [1, 2H]

    h2_w = jnp.zeros((2 * H, out_width), jnp.float32)                  # block-diag, lane-padded
    h2_w = h2_w.at[:H, :action_dim].set(params["p2_w"])
    h2_w = h2_w.at[H:, action_dim:action_dim + 1].set(params["v2_w"])
    h2_b = jnp.zeros((1, out_width), jnp.float32)
    h2_b = h2_b.at[:, :action_dim].set(params["p2_b"])
    h2_b = h2_b.at[:, action_dim:action_dim + 1].set(params["v2_b"])

    cast = lambda w: w.astype(compute_dtype)
    return (
        cast(params["f1_w"]), params["f1_b"].astype(jnp.float32),
        cast(params["f2_w"]), params["f2_b"].astype(jnp.float32),
        cast(h1_w), h1_b.astype(jnp.float32),
        cast(h2_w), h2_b.astype(jnp.float32),
    )


def actor_critic_forward(state, params, *, tile_b=512, compute_dtype=jnp.float32):
    """state: [B, state_dim] float32. Returns (action_logits [B, A], value [B, 1]).

    compute_dtype=jnp.bfloat16 feeds bf16 into the MXU (f32 accumulation) on
    v6e/v7x; default f32 matches the reference exactly.
    """
    assert tile_b % 8 == 0
    B, state_dim = state.shape
    H = params["f2_w"].shape[0]
    action_dim = params["p2_w"].shape[1]
    # Lane-dense output width: [logits | value] padded to a multiple of 128.
    out_width = max(128, ((action_dim + 1 + 127) // 128) * 128)

    weights = _fuse_params(params, action_dim, out_width, compute_dtype)

    def cost(batch):
        flops = 2 * batch * (state_dim * H + H * H + H * 2 * H + 2 * H * out_width)
        bytes_accessed = (batch * state_dim * 4
                          + sum(int(w.size) * w.dtype.itemsize for w in weights)
                          + batch * out_width * 4)
        return pl.CostEstimate(flops=flops, transcendentals=0,
                               bytes_accessed=bytes_accessed)

    if B <= tile_b:
        # Whole problem fits one VMEM-resident invocation: no grid machinery.
        out = pl.pallas_call(
            actor_critic_kernel,
            out_shape=jax.ShapeDtypeStruct((B, out_width), jnp.float32),
            in_specs=[pl.BlockSpec(memory_space=pltpu.MemorySpace.VMEM)]
                     * (1 + len(weights)),
            out_specs=pl.BlockSpec(memory_space=pltpu.MemorySpace.VMEM),
            cost_estimate=cost(B),
        )(state, *weights)
    else:
        # Batch tiling: state / output blocked on dim 0, weights VMEM-resident
        # via constant index_map. Batch axis is 'parallel' (megacore on v7x).
        n_tiles = pl.cdiv(B, tile_b)
        b_pad = n_tiles * tile_b
        if b_pad != B:
            state = jnp.pad(state, ((0, b_pad - B), (0, 0)))
        weight_specs = [pl.BlockSpec(w.shape, lambda i: (0, 0)) for w in weights]
        out = pl.pallas_call(
            actor_critic_kernel,
            grid=(n_tiles,),
            in_specs=[pl.BlockSpec((tile_b, state_dim), lambda i: (i, 0))]
                     + weight_specs,
            out_specs=pl.BlockSpec((tile_b, out_width), lambda i: (i, 0)),
            out_shape=jax.ShapeDtypeStruct((b_pad, out_width), jnp.float32),
            compiler_params=pltpu.CompilerParams(
                dimension_semantics=("parallel",)),
            cost_estimate=cost(b_pad),
        )(state, *weights)
        out = out[:B]

    action_logits = out[:, :action_dim]
    value = out[:, action_dim:action_dim + 1]
    return action_logits, value


def init_params(key, state_dim, action_dim, hidden_dim):
    """Deterministic init. Weights stored as [in_dim, out_dim] (y = x @ W + b)."""
    keys = jax.random.split(key, 12)

    def linear(kw, kb, fan_in, fan_out):
        bound = 1.0 / jnp.sqrt(fan_in)
        w = jax.random.uniform(kw, (fan_in, fan_out), jnp.float32, -bound, bound)
        b = jax.random.uniform(kb, (1, fan_out), jnp.float32, -bound, bound)
        return w, b

    f1_w, f1_b = linear(keys[0], keys[1], state_dim, hidden_dim)
    f2_w, f2_b = linear(keys[2], keys[3], hidden_dim, hidden_dim)
    p1_w, p1_b = linear(keys[4], keys[5], hidden_dim, hidden_dim)
    p2_w, p2_b = linear(keys[6], keys[7], hidden_dim, action_dim)
    v1_w, v1_b = linear(keys[8], keys[9], hidden_dim, hidden_dim)
    v2_w, v2_b = linear(keys[10], keys[11], hidden_dim, 1)

    return dict(
        f1_w=f1_w, f1_b=f1_b, f2_w=f2_w, f2_b=f2_b,
        p1_w=p1_w, p1_b=p1_b, p2_w=p2_w, p2_b=p2_b,
        v1_w=v1_w, v1_b=v1_b, v2_w=v2_w, v2_b=v2_b,
    )


def reference_forward(state, p):
    """Pure-JAX reference matching the PyTorch module semantics."""
    relu = lambda x: jnp.maximum(x, 0.0)
    feats = relu(relu(state @ p["f1_w"] + p["f1_b"]) @ p["f2_w"] + p["f2_b"])
    logits = relu(feats @ p["p1_w"] + p["p1_b"]) @ p["p2_w"] + p["p2_b"]
    value = relu(feats @ p["v1_w"] + p["v1_b"]) @ p["v2_w"] + p["v2_b"]
    return logits, value


if __name__ == "__main__":
    # Small shapes consistent with the module (hidden_dim default = 128).
    B, STATE_DIM, ACTION_DIM, HIDDEN_DIM = 8, 16, 4, 128

    key = jax.random.PRNGKey(0)
    k_state, k_params, k_big = jax.random.split(key, 3)

    state = jax.random.normal(k_state, (B, STATE_DIM), dtype=jnp.float32)
    params = init_params(k_params, STATE_DIM, ACTION_DIM, HIDDEN_DIM)

    # Small-batch path (single VMEM-resident invocation, no grid).
    logits, value = actor_critic_forward(state, params)
    logits, value = jax.block_until_ready((logits, value))
    ref_logits, ref_value = reference_forward(state, params)
    assert logits.shape == (B, ACTION_DIM)
    assert value.shape == (B, 1)
    assert jnp.allclose(logits, ref_logits, atol=1e-4, rtol=1e-4)
    assert jnp.allclose(value, ref_value, atol=1e-4, rtol=1e-4)

    # Large-batch path (batch-tiled, 'parallel' grid axis, ragged padding).
    B_BIG = 1000
    state_big = jax.random.normal(k_big, (B_BIG, STATE_DIM), dtype=jnp.float32)
    logits_b, value_b = actor_critic_forward(state_big, params, tile_b=256)
    logits_b, value_b = jax.block_until_ready((logits_b, value_b))
    ref_logits_b, ref_value_b = reference_forward(state_big, params)
    assert logits_b.shape == (B_BIG, ACTION_DIM)
    assert value_b.shape == (B_BIG, 1)
    assert jnp.allclose(logits_b, ref_logits_b, atol=1e-4, rtol=1e-4)
    assert jnp.allclose(value_b, ref_value_b, atol=1e-4, rtol=1e-4)

    print("KERNEL_OK")
</pallas_src>

<mosaic_0001>
module attributes {stable_mosaic.version = 11 : i64} {
  func.func @actor_critic_kernel(%arg0: memref<8x16xf32, #tpu.memory_space<vmem>>, %arg1: memref<16x128xf32, #tpu.memory_space<vmem>>, %arg2: memref<1x128xf32, #tpu.memory_space<vmem>>, %arg3: memref<128x128xf32, #tpu.memory_space<vmem>>, %arg4: memref<1x128xf32, #tpu.memory_space<vmem>>, %arg5: memref<128x256xf32, #tpu.memory_space<vmem>>, %arg6: memref<1x256xf32, #tpu.memory_space<vmem>>, %arg7: memref<256x128xf32, #tpu.memory_space<vmem>>, %arg8: memref<1x128xf32, #tpu.memory_space<vmem>>, %arg9: memref<8x128xf32, #tpu.memory_space<vmem>>) attributes {dimension_semantics = [], scalar_prefetch = 0 : i64, scratch_operands = 0 : i64, tpu.core_type = #tpu.core_type<tc>} {
    %c0 = arith.constant 0 : index
    %c0_0 = arith.constant 0 : index
    %0 = vector.load %arg0[%c0, %c0_0] : memref<8x16xf32, #tpu.memory_space<vmem>>, vector<8x16xf32>
    %c0_1 = arith.constant 0 : index
    %c0_2 = arith.constant 0 : index
    %1 = vector.load %arg1[%c0_1, %c0_2] : memref<16x128xf32, #tpu.memory_space<vmem>>, vector<16x128xf32>
    %cst = arith.constant dense<0.000000e+00> : vector<8x128xf32>
    %2 = tpu.matmul %0, %1, %cst {dimension_numbers = #tpu.dot_dimension_numbers<[1], [0], [0], [1], [0, 0, 1, 1], [], []>} : vector<8x16xf32>, vector<16x128xf32>, vector<8x128xf32> -> vector<8x128xf32>
    %c0_3 = arith.constant 0 : index
    %c0_4 = arith.constant 0 : index
    %3 = vector.load %arg2[%c0_3, %c0_4] : memref<1x128xf32, #tpu.memory_space<vmem>>, vector<1x128xf32>
    %4 = vector.broadcast %3 : vector<1x128xf32> to vector<8x128xf32>
    %5 = arith.addf %2, %4 : vector<8x128xf32>
    %cst_5 = arith.constant 0.000000e+00 : f32
    %6 = vector.broadcast %cst_5 : f32 to vector<8x128xf32>
    %7 = arith.maximumf %5, %6 : vector<8x128xf32>
    %c0_6 = arith.constant 0 : index
    %c0_7 = arith.constant 0 : index
    %8 = vector.load %arg3[%c0_6, %c0_7] : memref<128x128xf32, #tpu.memory_space<vmem>>, vector<128x128xf32>
    %cst_8 = arith.constant dense<0.000000e+00> : vector<8x128xf32>
    %9 = tpu.matmul %7, %8, %cst_8 {dimension_numbers = #tpu.dot_dimension_numbers<[1], [0], [0], [1], [0, 0, 1, 1], [], []>} : vector<8x128xf32>, vector<128x128xf32>, vector<8x128xf32> -> vector<8x128xf32>
    %c0_9 = arith.constant 0 : index
    %c0_10 = arith.constant 0 : index
    %10 = vector.load %arg4[%c0_9, %c0_10] : memref<1x128xf32, #tpu.memory_space<vmem>>, vector<1x128xf32>
    %11 = vector.broadcast %10 : vector<1x128xf32> to vector<8x128xf32>
    %12 = arith.addf %9, %11 : vector<8x128xf32>
    %cst_11 = arith.constant 0.000000e+00 : f32
    %13 = vector.broadcast %cst_11 : f32 to vector<8x128xf32>
    %14 = arith.maximumf %12, %13 : vector<8x128xf32>
    %c0_12 = arith.constant 0 : index
    %c0_13 = arith.constant 0 : index
    %15 = vector.load %arg5[%c0_12, %c0_13] : memref<128x256xf32, #tpu.memory_space<vmem>>, vector<128x256xf32>
    %cst_14 = arith.constant dense<0.000000e+00> : vector<8x256xf32>
    %16 = tpu.matmul %14, %15, %cst_14 {dimension_numbers = #tpu.dot_dimension_numbers<[1], [0], [0], [1], [0, 0, 1, 1], [], []>} : vector<8x128xf32>, vector<128x256xf32>, vector<8x256xf32> -> vector<8x256xf32>
    %c0_15 = arith.constant 0 : index
    %c0_16 = arith.constant 0 : index
    %17 = vector.load %arg6[%c0_15, %c0_16] : memref<1x256xf32, #tpu.memory_space<vmem>>, vector<1x256xf32>
    %18 = vector.broadcast %17 : vector<1x256xf32> to vector<8x256xf32>
    %19 = arith.addf %16, %18 : vector<8x256xf32>
    %cst_17 = arith.constant 0.000000e+00 : f32
    %20 = vector.broadcast %cst_17 : f32 to vector<8x256xf32>
    %21 = arith.maximumf %19, %20 : vector<8x256xf32>
    %c0_18 = arith.constant 0 : index
    %c0_19 = arith.constant 0 : index
    %22 = vector.load %arg7[%c0_18, %c0_19] : memref<256x128xf32, #tpu.memory_space<vmem>>, vector<256x128xf32>
    %cst_20 = arith.constant dense<0.000000e+00> : vector<8x128xf32>
    %23 = tpu.matmul %21, %22, %cst_20 {dimension_numbers = #tpu.dot_dimension_numbers<[1], [0], [0], [1], [0, 0, 1, 1], [], []>} : vector<8x256xf32>, vector<256x128xf32>, vector<8x128xf32> -> vector<8x128xf32>
    %c0_21 = arith.constant 0 : index
    %c0_22 = arith.constant 0 : index
    %24 = vector.load %arg8[%c0_21, %c0_22] : memref<1x128xf32, #tpu.memory_space<vmem>>, vector<1x128xf32>
    %25 = vector.broadcast %24 : vector<1x128xf32> to vector<8x128xf32>
    %26 = arith.addf %23, %25 : vector<8x128xf32>
    %c0_23 = arith.constant 0 : index
    %c0_24 = arith.constant 0 : index
    %27 = vector.load %arg9[%c0_23, %c0_24] : memref<8x128xf32, #tpu.memory_space<vmem>>, vector<8x128xf32>
    tpu.vector_store %arg9[%c0_23, %c0_24], %26 {strides = array<i32>} : memref<8x128xf32, #tpu.memory_space<vmem>>, vector<8x128xf32>,
    return
  }
}

</mosaic_0001>

<llo_original>
// kernel: tpu_custom_call.1
$region0: #{tpu_custom_call.1}
  #allocation0 [shape = 'u32[]', space=smem, size = 0x4, offset = 0x4, fixed_abs, tag = 'smem constant byte address 0x4 - core index']
  #allocation1 [shape = 'u32[144,128]{1,0:T(1,128)}', space=vmem, size = 0x12000, scoped, tag = 'internal scratch']
  %s0 = inlined_call_operand.hbm [shape: f32[8,16], index: 0, kind: input, shape index: {}]
  %s1 = inlined_call_operand.hbm [shape: f32[16,128], index: 1, kind: input, shape index: {}]
  %s2 = inlined_call_operand.vmem [shape: f32[1,128], index: 2, kind: input, shape index: {}]
  %s3 = inlined_call_operand.hbm [shape: f32[128,128], index: 3, kind: input, shape index: {}]
  %s4 = inlined_call_operand.vmem [shape: f32[1,128], index: 4, kind: input, shape index: {}]
  %s5 = inlined_call_operand.hbm [shape: f32[128,256], index: 5, kind: input, shape index: {}]
  %s6 = inlined_call_operand.vmem [shape: f32[1,256], index: 6, kind: input, shape index: {}]
  %s7 = inlined_call_operand.hbm [shape: f32[256,128], index: 7, kind: input, shape index: {}]
  %s8 = inlined_call_operand.vmem [shape: f32[1,128], index: 8, kind: input, shape index: {}]
  %s9 = inlined_call_operand.hbm [shape: f32[8,128], index: 9, kind: output, shape index: {}]
  %s10 = sld [smem:[#allocation0]]
  $region66: #{tpu_custom_call.1} parent=0
    _
  %s12 = ssub.s32 1, %s10
  %s13 = scalar_select 0, %s12, %s10
  $region1: #{tpu_custom_call.1} parent=0
    #allocation2 [shape = 'u8[4096]{0}', space=vmem, size = 0x1000, scoped, tag = 'input window, operand 0, single buffered']
    #allocation3 [shape = 's32[1]{0}', space=sflag, size = 0x4, scoped, tag = 'scoped memory for tpu_custom_call.1']
    #allocation4 [shape = 's32[1]{0}', space=sflag, size = 0x4, scoped, tag = 'scoped memory for tpu_custom_call.1']
    #allocation5 [shape = 'u8[8192]{0}', space=vmem, size = 0x2000, scoped, tag = 'input window, operand 1, single buffered']
    #allocation6 [shape = 's32[1]{0}', space=sflag, size = 0x4, scoped, tag = 'scoped memory for tpu_custom_call.1']
    #allocation7 [shape = 'u8[65536]{0}', space=vmem, size = 0x10000, scoped, tag = 'input window, operand 3, single buffered']
    #allocation8 [shape = 'u8[131072]{0}', space=vmem, size = 0x20000, scoped, tag = 'input window, operand 5, single buffered']
    #allocation9 [shape = 's32[1]{0}', space=sflag, size = 0x4, scoped, tag = 'scoped memory for tpu_custom_call.1']
    #allocation10 [shape = 'u8[131072]{0}', space=vmem, size = 0x20000, scoped, tag = 'input window, operand 7, single buffered']
    #allocation11 [shape = 'u8[4096]{0}', space=vmem, size = 0x1000, scoped, tag = 'output window, operand 0, single buffered']
    %14 = vsyncpa [#allocation3], 0
    %15 = vsyncpa [#allocation6], 0
    %16 = vsyncpa [#allocation9], 0
    %17 = vsyncpa [#allocation4], 0
    // Predicated region
    $region2: #{tpu_custom_call.1} parent=1 // pred_check
      _
    $region3: #{tpu_custom_call.1} parent=1 // pred_check_branch
      %19 = sbr.rel (0) target = $region5
    $region4: #{tpu_custom_call.1} parent=1 // pred_region
      %s21 = ssub.s32 128, 128
      %22 = vsyncadd [#allocation3], %s21
      %s24 = sshll.u32 [#allocation2], 4
      %s25 = int_to_ptr.vmem [resolvable:$true] %s24
      %27 = dma.hbm_to_vmem [thread:$0]  %s0, 128, %s25, [#allocation3]
    $region5: #{tpu_custom_call.1} parent=1 // pred_fallthru
      _
    // Predicated region
    $region6: #{tpu_custom_call.1} parent=1 // pred_check
      _
    $region7: #{tpu_custom_call.1} parent=1 // pred_check_branch
      %29 = sbr.rel (0) target = $region9
    $region8: #{tpu_custom_call.1} parent=1 // pred_region
      %s31 = ssub.s32 256, 256
      %32 = vsyncadd [#allocation6], %s31
      %s33 = sshll.u32 [#allocation5], 4
      %s34 = int_to_ptr.vmem [resolvable:$true] %s33
      %39 = dma.hbm_to_vmem [thread:$0]  %s1, 256, %s34, [#allocation6], 128, 128, 8
    $region9: #{tpu_custom_call.1} parent=1 // pred_fallthru
      _
    // Predicated region
    $region10: #{tpu_custom_call.1} parent=1 // pred_check
      _
    $region11: #{tpu_custom_call.1} parent=1 // pred_check_branch
      %41 = sbr.rel (0) target = $region13
    $region12: #{tpu_custom_call.1} parent=1 // pred_region
      _
    $region13: #{tpu_custom_call.1} parent=1 // pred_fallthru
      _
    // Predicated region
    $region14: #{tpu_custom_call.1} parent=1 // pred_check
      _
    $region15: #{tpu_custom_call.1} parent=1 // pred_check_branch
      %43 = sbr.rel (0) target = $region17
    $region16: #{tpu_custom_call.1} parent=1 // pred_region
      %s45 = ssub.s32 2048, 2048
      %46 = vsyncadd [#allocation6], %s45
      %s47 = sshll.u32 [#allocation7], 4
      %s48 = int_to_ptr.vmem [resolvable:$true] %s47
      %53 = dma.hbm_to_vmem [thread:$0]  %s3, 2048, %s48, [#allocation6], 128, 128, 8
    $region17: #{tpu_custom_call.1} parent=1 // pred_fallthru
      _
    // Predicated region
    $region18: #{tpu_custom_call.1} parent=1 // pred_check
      _
    $region19: #{tpu_custom_call.1} parent=1 // pred_check_branch
      %55 = sbr.rel (0) target = $region21
    $region20: #{tpu_custom_call.1} parent=1 // pred_region
      _
    $region21: #{tpu_custom_call.1} parent=1 // pred_fallthru
      _
    // Predicated region
    $region22: #{tpu_custom_call.1} parent=1 // pred_check
      _
    $region23: #{tpu_custom_call.1} parent=1 // pred_check_branch
      %57 = sbr.rel (0) target = $region25
    $region24: #{tpu_custom_call.1} parent=1 // pred_region
      %s59 = ssub.s32 4096, 4096
      %60 = vsyncadd [#allocation9], %s59
      %s61 = sshll.u32 [#allocation8], 4
      %s62 = int_to_ptr.vmem [resolvable:$true] %s61
      %67 = dma.hbm_to_vmem [thread:$0]  %s5, 4096, %s62, [#allocation9], 256, 256, 16
    $region25: #{tpu_custom_call.1} parent=1 // pred_fallthru
      _
    // Predicated region
    $region26: #{tpu_custom_call.1} parent=1 // pred_check
      _
    $region27: #{tpu_custom_call.1} parent=1 // pred_check_branch
      %69 = sbr.rel (0) target = $region29
    $region28: #{tpu_custom_call.1} parent=1 // pred_region
      _
    $region29: #{tpu_custom_call.1} parent=1 // pred_fallthru
      _
    // Predicated region
    $region30: #{tpu_custom_call.1} parent=1 // pred_check
      _
    $region31: #{tpu_custom_call.1} parent=1 // pred_check_branch
      %71 = sbr.rel (0) target = $region33
    $region32: #{tpu_custom_call.1} parent=1 // pred_region
      %s73 = ssub.s32 4096, 4096
      %74 = vsyncadd [#allocation9], %s73
      %s75 = sshll.u32 [#allocation10], 4
      %s76 = int_to_ptr.vmem [resolvable:$true] %s75
      %81 = dma.hbm_to_vmem [thread:$0]  %s7, 4096, %s76, [#allocation9], 128, 128, 8
    $region33: #{tpu_custom_call.1} parent=1 // pred_fallthru
      _
    // Predicated region
    $region34: #{tpu_custom_call.1} parent=1 // pred_check
      _
    $region35: #{tpu_custom_call.1} parent=1 // pred_check_branch
      %83 = sbr.rel (0) target = $region37
    $region36: #{tpu_custom_call.1} parent=1 // pred_region
      _
    $region37: #{tpu_custom_call.1} parent=1 // pred_fallthru
      _
    // Predicated region
    $region38: #{tpu_custom_call.1} parent=1 // pred_check
      _
    $region39: #{tpu_custom_call.1} parent=1 // pred_check_branch
      %85 = sbr.rel (0) target = $region41
    $region40: #{tpu_custom_call.1} parent=1 // pred_region
      %86 = dma.done [#allocation3], 128
    $region41: #{tpu_custom_call.1} parent=1 // pred_fallthru
      _
    // Predicated region
    $region42: #{tpu_custom_call.1} parent=1 // pred_check
      _
    $region43: #{tpu_custom_call.1} parent=1 // pred_check_branch
      %88 = sbr.rel (0) target = $region45
    $region44: #{tpu_custom_call.1} parent=1 // pred_region
      %89 = dma.done [#allocation6], 256
    $region45: #{tpu_custom_call.1} parent=1 // pred_fallthru
      _
    // Predicated region
    $region46: #{tpu_custom_call.1} parent=1 // pred_check
      _
    $region47: #{tpu_custom_call.1} parent=1 // pred_check_branch
      %91 = sbr.rel (0) target = $region49
    $region48: #{tpu_custom_call.1} parent=1 // pred_region
      %92 = dma.done [#allocation6], 2048
    $region49: #{tpu_custom_call.1} parent=1 // pred_fallthru
      _
    // Predicated region
    $region50: #{tpu_custom_call.1} parent=1 // pred_check
      _
    $region51: #{tpu_custom_call.1} parent=1 // pred_check_branch
      %94 = sbr.rel (0) target = $region53
    $region52: #{tpu_custom_call.1} parent=1 // pred_region
      %95 = dma.done [#allocation9], 4096
    $region53: #{tpu_custom_call.1} parent=1 // pred_fallthru
      _
    // Predicated region
    $region54: #{tpu_custom_call.1} parent=1 // pred_check
      _
    $region55: #{tpu_custom_call.1} parent=1 // pred_check_branch
      %97 = sbr.rel (0) target = $region57
    $region56: #{tpu_custom_call.1} parent=1 // pred_region
      %98 = dma.done [#allocation9], 4096
    $region57: #{tpu_custom_call.1} parent=1 // pred_fallthru
      _
    %v99 = vld [vmem:[#allocation2] sm:$0xff]
    %v100 = vld [vmem:[#allocation5] sm:$0xff]
    %v101 = vld [vmem:[#allocation5 + $0x8] sm:$0xff]
    %v102 = vld [vmem:[%s2] sm:$0x1]
    %v104 = vlaneseq
    %v105 = vshrl.u32 %v104, 7
    %v106 = vsub.s32 0, %v105
    %v107 = vrot.slane %v102, %v106
    %vm109 = vcmask 130048
    %v111 = vsel %vm109, %v99, 0
    %113 = vmatprep.subr.mxu0 0.0
    %114 = vmatpush1.msra.mxu0 %v100
    %115 = vmatprep.subr.mxu0 0.0
    %116 = vmatpush1.msra.mxu0 %v101
    %117 = vmatprep.subr.mxu0 0.0
    %118 = vmatpush1.msra.mxu0 0.0
    %119 = vmatprep.subr.mxu0 0.0
    %120 = vmatpush1.msra.mxu0 0.0
    %121 = vmatprep.subr.mxu0 0.0
    %122 = vmatpush1.msra.mxu0 0.0
    %123 = vmatprep.subr.mxu0 0.0
    %124 = vmatpush1.msra.mxu0 0.0
    %125 = vmatprep.subr.mxu0 0.0
    %126 = vmatpush1.msra.mxu0 0.0
    %127 = vmatprep.subr.mxu0 0.0
    %128 = vmatpush1.msra.mxu0 0.0
    %129 = vmatprep.subr.mxu0 0.0
    %130 = vmatpush1.msra.mxu0 0.0
    %131 = vmatprep.subr.mxu0 0.0
    %132 = vmatpush1.msra.mxu0 0.0
    %133 = vmatprep.subr.mxu0 0.0
    %134 = vmatpush1.msra.mxu0 0.0
    %135 = vmatprep.subr.mxu0 0.0
    %136 = vmatpush1.msra.mxu0 0.0
    %137 = vmatprep.subr.mxu0 0.0
    %138 = vmatpush1.msra.mxu0 0.0
    %139 = vmatprep.subr.mxu0 0.0
    %140 = vmatpush1.msra.mxu0 0.0
    %141 = vmatprep.subr.mxu0 0.0
    %142 = vmatpush1.msra.mxu0 0.0
    %143 = vmatprep.subr.mxu0 0.0
    %144 = vmatpush1.msra.mxu0 0.0
    %145 = vmatprep.subr.mxu0 0.0
    %146 = vmatpush1.msra.mxu0 0.0
    %147 = vmatprep.subr.mxu0 0.0
    %148 = vmatpush1.msra.mxu0 0.0
    %149 = vmatprep.subr.mxu0 0.0
    %150 = vmatpush1.msra.mxu0 0.0
    %151 = vmatprep.subr.mxu0 0.0
    %152 = vmatpush1.msra.mxu0 0.0
    %153 = vmatprep.subr.mxu0 0.0
    %154 = vmatpush1.msra.mxu0 0.0
    %155 = vmatprep.subr.mxu0 0.0
    %156 = vmatpush1.msra.mxu0 0.0
    %157 = vmatprep.subr.mxu0 0.0
    %158 = vmatpush1.msra.mxu0 0.0
    %159 = vmatprep.subr.mxu0 0.0
    %160 = vmatpush1.msra.mxu0 0.0
    %161 = vmatprep.subr.mxu0 0.0
    %162 = vmatpush1.msra.mxu0 0.0
    %163 = vmatprep.subr.mxu0 0.0
    %164 = vmatpush1.msra.mxu0 0.0
    %165 = vmatprep.subr.mxu0 0.0
    %166 = vmatpush1.msra.mxu0 0.0
    %167 = vmatprep.subr.mxu0 0.0
    %168 = vmatpush1.msra.mxu0 0.0
    %169 = vmatprep.subr.mxu0 0.0
    %170 = vmatpush1.msra.mxu0 0.0
    %171 = vmatprep.subr.mxu0 0.0
    %172 = vmatpush1.msra.mxu0 0.0
    %173 = vmatprep.subr.mxu0 0.0
    %174 = vmatpush1.msra.mxu0 0.0
    %175 = vmatprep.subr.mxu0 0.0
    %176 = vmatpush1.msra.mxu0 0.0
    %177 = vmatprep.mubr.f32.mxu0 0.0
    %178 = vmatmul.mubr.f32.gmra.mrb[0].mxu0 %v111
    %v179 = vpop.f32.mrb[0].mxu0
    %v180 = vadd.f32 %v107, %v179
    %v181 = vpop.f32.mrb[0].mxu0
    %182 = vdwg.mxu0
    %v183 = vmax.f32 %v180, 0.0
    %v184 = vld [vmem:[#allocation7] sm:$0xff]
    %v185 = vld [vmem:[#allocation7 + $0x8] sm:$0xff]
    %v186 = vld [vmem:[#allocation7 + $0x10] sm:$0xff]
    %v187 = vld [vmem:[#allocation7 + $0x18] sm:$0xff]
    %v188 = vld [vmem:[#allocation7 + $0x20] sm:$0xff]
    %v189 = vld [vmem:[#allocation7 + $0x28] sm:$0xff]
    %v190 = vld [vmem:[#allocation7 + $0x30] sm:$0xff]
    %v191 = vld [vmem:[#allocation7 + $0x38] sm:$0xff]
    %v192 = vld [vmem:[#allocation7 + $0x40] sm:$0xff]
    %v193 = vld [vmem:[#allocation7 + $0x48] sm:$0xff]
    %v194 = vld [vmem:[#allocation7 + $0x50] sm:$0xff]
    %v195 = vld [vmem:[#allocation7 + $0x58] sm:$0xff]
    %v196 = vld [vmem:[#allocation7 + $0x60] sm:$0xff]
    %v197 = vld [vmem:[#allocation7 + $0x68] sm:$0xff]
    %v198 = vld [vmem:[#allocation7 + $0x70] sm:$0xff]
    %v199 = vld [vmem:[#allocation7 + $0x78] sm:$0xff]
    %v200 = vld [vmem:[%s4] sm:$0x1]
    %v202 = vlaneseq
    %v203 = vshrl.u32 %v202, 7
    %v204 = vsub.s32 0, %v203
    %v205 = vrot.slane %v200, %v204
    %207 = vmatprep.subr.mxu0 0.0
    %208 = vmatpush1.msra.mxu0 %v184
    %209 = vmatprep.subr.mxu0 0.0
    %210 = vmatpush1.msra.mxu0 %v185
    %211 = vmatprep.subr.mxu0 0.0
    %212 = vmatpush1.msra.mxu0 %v186
    %213 = vmatprep.subr.mxu0 0.0
    %214 = vmatpush1.msra.mxu0 %v187
    %215 = vmatprep.subr.mxu0 0.0
    %216 = vmatpush1.msra.mxu0 %v188
    %217 = vmatprep.subr.mxu0 0.0
    %218 = vmatpush1.msra.mxu0 %v189
    %219 = vmatprep.subr.mxu0 0.0
    %220 = vmatpush1.msra.mxu0 %v190
    %221 = vmatprep.subr.mxu0 0.0
    %222 = vmatpush1.msra.mxu0 %v191
    %223 = vmatprep.subr.mxu0 0.0
    %224 = vmatpush1.msra.mxu0 %v192
    %225 = vmatprep.subr.mxu0 0.0
    %226 = vmatpush1.msra.mxu0 %v193
    %227 = vmatprep.subr.mxu0 0.0
    %228 = vmatpush1.msra.mxu0 %v194
    %229 = vmatprep.subr.mxu0 0.0
    %230 = vmatpush1.msra.mxu0 %v195
    %231 = vmatprep.subr.mxu0 0.0
    %232 = vmatpush1.msra.mxu0 %v196
    %233 = vmatprep.subr.mxu0 0.0
    %234 = vmatpush1.msra.mxu0 %v197
    %235 = vmatprep.subr.mxu0 0.0
    %236 = vmatpush1.msra.mxu0 %v198
    %237 = vmatprep.subr.mxu0 0.0
    %238 = vmatpush1.msra.mxu0 %v199
    %239 = vmatprep.subr.mxu0 0.0
    %240 = vmatpush1.msra.mxu0 0.0
    %241 = vmatprep.subr.mxu0 0.0
    %242 = vmatpush1.msra.mxu0 0.0
    %243 = vmatprep.subr.mxu0 0.0
    %244 = vmatpush1.msra.mxu0 0.0
    %245 = vmatprep.subr.mxu0 0.0
    %246 = vmatpush1.msra.mxu0 0.0
    %247 = vmatprep.subr.mxu0 0.0
    %248 = vmatpush1.msra.mxu0 0.0
    %249 = vmatprep.subr.mxu0 0.0
    %250 = vmatpush1.msra.mxu0 0.0
    %251 = vmatprep.subr.mxu0 0.0
    %252 = vmatpush1.msra.mxu0 0.0
    %253 = vmatprep.subr.mxu0 0.0
    %254 = vmatpush1.msra.mxu0 0.0
    %255 = vmatprep.subr.mxu0 0.0
    %256 = vmatpush1.msra.mxu0 0.0
    %257 = vmatprep.subr.mxu0 0.0
    %258 = vmatpush1.msra.mxu0 0.0
    %259 = vmatprep.subr.mxu0 0.0
    %260 = vmatpush1.msra.mxu0 0.0
    %261 = vmatprep.subr.mxu0 0.0
    %262 = vmatpush1.msra.mxu0 0.0
    %263 = vmatprep.subr.mxu0 0.0
    %264 = vmatpush1.msra.mxu0 0.0
    %265 = vmatprep.subr.mxu0 0.0
    %266 = vmatpush1.msra.mxu0 0.0
    %267 = vmatprep.subr.mxu0 0.0
    %268 = vmatpush1.msra.mxu0 0.0
    %269 = vmatprep.subr.mxu0 0.0
    %270 = vmatpush1.msra.mxu0 0.0
    %271 = vmatprep.mubr.f32.mxu0 0.0
    %272 = vmatmul.mubr.f32.gmra.mrb[0].mxu0 %v183
    %v273 = vpop.f32.mrb[0].mxu0
    %v274 = vadd.f32 %v205, %v273
    %v275 = vpop.f32.mrb[0].mxu0
    %276 = vdwg.mxu0
    %v277 = vmax.f32 %v274, 0.0
    %v278 = vld [vmem:[#allocation8] sm:$0xff]
    %v279 = vld [vmem:[#allocation8 + $0x8] sm:$0xff]
    %v280 = vld [vmem:[#allocation8 + $0x10] sm:$0xff]
    %v281 = vld [vmem:[#allocation8 + $0x18] sm:$0xff]
    %v282 = vld [vmem:[#allocation8 + $0x20] sm:$0xff]
    %v283 = vld [vmem:[#allocation8 + $0x28] sm:$0xff]
    %v284 = vld [vmem:[#allocation8 + $0x30] sm:$0xff]
    %v285 = vld [vmem:[#allocation8 + $0x38] sm:$0xff]
    %v286 = vld [vmem:[#allocation8 + $0x40] sm:$0xff]
    %v287 = vld [vmem:[#allocation8 + $0x48] sm:$0xff]
    %v288 = vld [vmem:[#allocation8 + $0x50] sm:$0xff]
    %v289 = vld [vmem:[#allocation8 + $0x58] sm:$0xff]
    %v290 = vld [vmem:[#allocation8 + $0x60] sm:$0xff]
    %v291 = vld [vmem:[#allocation8 + $0x68] sm:$0xff]
    %v292 = vld [vmem:[#allocation8 + $0x70] sm:$0xff]
    %v293 = vld [vmem:[#allocation8 + $0x78] sm:$0xff]
    %v294 = vld [vmem:[#allocation8 + $0x80] sm:$0xff]
    %v295 = vld [vmem:[#allocation8 + $0x88] sm:$0xff]
    %v296 = vld [vmem:[#allocation8 + $0x90] sm:$0xff]
    %v297 = vld [vmem:[#allocation8 + $0x98] sm:$0xff]
    %v298 = vld [vmem:[#allocation8 + $0xa0] sm:$0xff]
    %v299 = vld [vmem:[#allocation8 + $0xa8] sm:$0xff]
    %v300 = vld [vmem:[#allocation8 + $0xb0] sm:$0xff]
    %v301 = vld [vmem:[#allocation8 + $0xb8] sm:$0xff]
    %v302 = vld [vmem:[#allocation8 + $0xc0] sm:$0xff]
    %v303 = vld [vmem:[#allocation8 + $0xc8] sm:$0xff]
    %v304 = vld [vmem:[#allocation8 + $0xd0] sm:$0xff]
    %v305 = vld [vmem:[#allocation8 + $0xd8] sm:$0xff]
    %v306 = vld [vmem:[#allocation8 + $0xe0] sm:$0xff]
    %v307 = vld [vmem:[#allocation8 + $0xe8] sm:$0xff]
    %v308 = vld [vmem:[#allocation8 + $0xf0] sm:$0xff]
    %v309 = vld [vmem:[#allocation8 + $0xf8] sm:$0xff]
    %v310 = vld [vmem:[%s6] sm:$0x3]
    %v312 = vlaneseq
    %v313 = vshrl.u32 %v312, 7
    %v314 = vsub.s32 0, %v313
    %v315 = vrot.slane %v310, %v314
    %v316 = vlaneseq
    %v317 = vshrl.u32 %v316, 7
    %v318 = vsub.s32 1, %v317
    %v319 = vrot.slane %v310, %v318
    %322 = vmatprep.subr.mxu0 %v279
    %323 = vmatpush1.msra.mxu0 %v278
    %324 = vmatprep.subr.mxu0 %v281
    %325 = vmatpush1.msra.mxu0 %v280
    %326 = vmatprep.subr.mxu0 %v283
    %327 = vmatpush1.msra.mxu0 %v282
    %328 = vmatprep.subr.mxu0 %v285
    %329 = vmatpush1.msra.mxu0 %v284
    %330 = vmatprep.subr.mxu0 %v287
    %331 = vmatpush1.msra.mxu0 %v286
    %332 = vmatprep.subr.mxu0 %v289
    %333 = vmatpush1.msra.mxu0 %v288
    %334 = vmatprep.subr.mxu0 %v291
    %335 = vmatpush1.msra.mxu0 %v290
    %336 = vmatprep.subr.mxu0 %v293
    %337 = vmatpush1.msra.mxu0 %v292
    %338 = vmatprep.subr.mxu0 %v295
    %339 = vmatpush1.msra.mxu0 %v294
    %340 = vmatprep.subr.mxu0 %v297
    %341 = vmatpush1.msra.mxu0 %v296
    %342 = vmatprep.subr.mxu0 %v299
    %343 = vmatpush1.msra.mxu0 %v298
    %344 = vmatprep.subr.mxu0 %v301
    %345 = vmatpush1.msra.mxu0 %v300
    %346 = vmatprep.subr.mxu0 %v303
    %347 = vmatpush1.msra.mxu0 %v302
    %348 = vmatprep.subr.mxu0 %v305
    %349 = vmatpush1.msra.mxu0 %v304
    %350 = vmatprep.subr.mxu0 %v307
    %351 = vmatpush1.msra.mxu0 %v306
    %352 = vmatprep.subr.mxu0 %v309
    %353 = vmatpush1.msra.mxu0 %v308
    %354 = vmatprep.subr.mxu0 0.0
    %355 = vmatpush1.msra.mxu0 0.0
    %356 = vmatprep.subr.mxu0 0.0
    %357 = vmatpush1.msra.mxu0 0.0
    %358 = vmatprep.subr.mxu0 0.0
    %359 = vmatpush1.msra.mxu0 0.0
    %360 = vmatprep.subr.mxu0 0.0
    %361 = vmatpush1.msra.mxu0 0.0
    %362 = vmatprep.subr.mxu0 0.0
    %363 = vmatpush1.msra.mxu0 0.0
    %364 = vmatprep.subr.mxu0 0.0
    %365 = vmatpush1.msra.mxu0 0.0
    %366 = vmatprep.subr.mxu0 0.0
    %367 = vmatpush1.msra.mxu0 0.0
    %368 = vmatprep.subr.mxu0 0.0
    %369 = vmatpush1.msra.mxu0 0.0
    %370 = vmatprep.subr.mxu0 0.0
    %371 = vmatpush1.msra.mxu0 0.0
    %372 = vmatprep.subr.mxu0 0.0
    %373 = vmatpush1.msra.mxu0 0.0
    %374 = vmatprep.subr.mxu0 0.0
    %375 = vmatpush1.msra.mxu0 0.0
    %376 = vmatprep.subr.mxu0 0.0
    %377 = vmatpush1.msra.mxu0 0.0
    %378 = vmatprep.subr.mxu0 0.0
    %379 = vmatpush1.msra.mxu0 0.0
    %380 = vmatprep.subr.mxu0 0.0
    %381 = vmatpush1.msra.mxu0 0.0
    %382 = vmatprep.subr.mxu0 0.0
    %383 = vmatpush1.msra.mxu0 0.0
    %384 = vmatprep.subr.mxu0 0.0
    %385 = vmatpush1.msra.mxu0 0.0
    %386 = vmatprep.mubr.f32.mxu0 0.0
    %387 = vmatmul.mubr.f32.gmra.mrb[0].mxu0 %v277
    %v388 = vpop.f32.mrb[0].mxu0
    %v389 = vadd.f32 %v315, %v388
    %v390 = vpop.f32.mrb[0].mxu0
    %v391 = vadd.f32 %v319, %v390
    %392 = vdwg.mxu0
    %v393 = vmax.f32 %v389, 0.0
    %v394 = vmax.f32 %v391, 0.0
    %v395 = vld [vmem:[#allocation10] sm:$0xff]
    %v396 = vld [vmem:[#allocation10 + $0x8] sm:$0xff]
    %v397 = vld [vmem:[#allocation10 + $0x10] sm:$0xff]
    %v398 = vld [vmem:[#allocation10 + $0x18] sm:$0xff]
    %v399 = vld [vmem:[#allocation10 + $0x20] sm:$0xff]
    %v400 = vld [vmem:[#allocation10 + $0x28] sm:$0xff]
    %v401 = vld [vmem:[#allocation10 + $0x30] sm:$0xff]
    %v402 = vld [vmem:[#allocation10 + $0x38] sm:$0xff]
    %v403 = vld [vmem:[#allocation10 + $0x40] sm:$0xff]
    %v404 = vld [vmem:[#allocation10 + $0x48] sm:$0xff]
    %v405 = vld [vmem:[#allocation10 + $0x50] sm:$0xff]
    %v406 = vld [vmem:[#allocation10 + $0x58] sm:$0xff]
    %v407 = vld [vmem:[#allocation10 + $0x60] sm:$0xff]
    %v408 = vld [vmem:[#allocation10 + $0x68] sm:$0xff]
    %v409 = vld [vmem:[#allocation10 + $0x70] sm:$0xff]
    %v410 = vld [vmem:[#allocation10 + $0x78] sm:$0xff]
    %v411 = vld [vmem:[#allocation10 + $0x80] sm:$0xff]
    %v412 = vld [vmem:[#allocation10 + $0x88] sm:$0xff]
    %v413 = vld [vmem:[#allocation10 + $0x90] sm:$0xff]
    %v414 = vld [vmem:[#allocation10 + $0x98] sm:$0xff]
    %v415 = vld [vmem:[#allocation10 + $0xa0] sm:$0xff]
    %v416 = vld [vmem:[#allocation10 + $0xa8] sm:$0xff]
    %v417 = vld [vmem:[#allocation10 + $0xb0] sm:$0xff]
    %v418 = vld [vmem:[#allocation10 + $0xb8] sm:$0xff]
    %v419 = vld [vmem:[#allocation10 + $0xc0] sm:$0xff]
    %v420 = vld [vmem:[#allocation10 + $0xc8] sm:$0xff]
    %v421 = vld [vmem:[#allocation10 + $0xd0] sm:$0xff]
    %v422 = vld [vmem:[#allocation10 + $0xd8] sm:$0xff]
    %v423 = vld [vmem:[#allocation10 + $0xe0] sm:$0xff]
    %v424 = vld [vmem:[#allocation10 + $0xe8] sm:$0xff]
    %v425 = vld [vmem:[#allocation10 + $0xf0] sm:$0xff]
    %v426 = vld [vmem:[#allocation10 + $0xf8] sm:$0xff]
    %v427 = vld [vmem:[%s8] sm:$0x1]
    %v429 = vlaneseq
    %v430 = vshrl.u32 %v429, 7
    %v431 = vsub.s32 0, %v430
    %v432 = vrot.slane %v427, %v431
    %434 = vmatprep.subr.mxu0 0.0
    %435 = vmatpush1.msra.mxu0 %v395
    %436 = vmatprep.subr.mxu0 0.0
    %437 = vmatpush1.msra.mxu0 %v396
    %438 = vmatprep.subr.mxu0 0.0
    %439 = vmatpush1.msra.mxu0 %v397
    %440 = vmatprep.subr.mxu0 0.0
    %441 = vmatpush1.msra.mxu0 %v398
    %442 = vmatprep.subr.mxu0 0.0
    %443 = vmatpush1.msra.mxu0 %v399
    %444 = vmatprep.subr.mxu0 0.0
    %445 = vmatpush1.msra.mxu0 %v400
    %446 = vmatprep.subr.mxu0 0.0
    %447 = vmatpush1.msra.mxu0 %v401
    %448 = vmatprep.subr.mxu0 0.0
    %449 = vmatpush1.msra.mxu0 %v402
    %450 = vmatprep.subr.mxu0 0.0
    %451 = vmatpush1.msra.mxu0 %v403
    %452 = vmatprep.subr.mxu0 0.0
    %453 = vmatpush1.msra.mxu0 %v404
    %454 = vmatprep.subr.mxu0 0.0
    %455 = vmatpush1.msra.mxu0 %v405
    %456 = vmatprep.subr.mxu0 0.0
    %457 = vmatpush1.msra.mxu0 %v406
    %458 = vmatprep.subr.mxu0 0.0
    %459 = vmatpush1.msra.mxu0 %v407
    %460 = vmatprep.subr.mxu0 0.0
    %461 = vmatpush1.msra.mxu0 %v408
    %462 = vmatprep.subr.mxu0 0.0
    %463 = vmatpush1.msra.mxu0 %v409
    %464 = vmatprep.subr.mxu0 0.0
    %465 = vmatpush1.msra.mxu0 %v410
    %466 = vmatprep.subr.mxu0 0.0
    %467 = vmatpush1.msra.mxu0 %v411
    %468 = vmatprep.subr.mxu0 0.0
    %469 = vmatpush1.msra.mxu0 %v412
    %470 = vmatprep.subr.mxu0 0.0
    %471 = vmatpush1.msra.mxu0 %v413
    %472 = vmatprep.subr.mxu0 0.0
    %473 = vmatpush1.msra.mxu0 %v414
    %474 = vmatprep.subr.mxu0 0.0
    %475 = vmatpush1.msra.mxu0 %v415
    %476 = vmatprep.subr.mxu0 0.0
    %477 = vmatpush1.msra.mxu0 %v416
    %478 = vmatprep.subr.mxu0 0.0
    %479 = vmatpush1.msra.mxu0 %v417
    %480 = vmatprep.subr.mxu0 0.0
    %481 = vmatpush1.msra.mxu0 %v418
    %482 = vmatprep.subr.mxu0 0.0
    %483 = vmatpush1.msra.mxu0 %v419
    %484 = vmatprep.subr.mxu0 0.0
    %485 = vmatpush1.msra.mxu0 %v420
    %486 = vmatprep.subr.mxu0 0.0
    %487 = vmatpush1.msra.mxu0 %v421
    %488 = vmatprep.subr.mxu0 0.0
    %489 = vmatpush1.msra.mxu0 %v422
    %490 = vmatprep.subr.mxu0 0.0
    %491 = vmatpush1.msra.mxu0 %v423
    %492 = vmatprep.subr.mxu0 0.0
    %493 = vmatpush1.msra.mxu0 %v424
    %494 = vmatprep.subr.mxu0 0.0
    %495 = vmatpush1.msra.mxu0 %v425
    %496 = vmatprep.subr.mxu0 0.0
    %497 = vmatpush1.msra.mxu0 %v426
    %498 = vmatprep.mubr.f32.mxu0 %v394
    %499 = vmatmul.mubr.f32.gmra.mrb[0].mxu0 %v393
    %v500 = vpop.f32.mrb[0].mxu0
    %v501 = vadd.f32 %v432, %v500
    %v502 = vpop.f32.mrb[0].mxu0
    %503 = vdwg.mxu0
    %504 = vst [vmem:[#allocation11] sm:$0xff] %v501
    // Predicated region
    $region58: #{tpu_custom_call.1} parent=1 // pred_check
      _
    $region59: #{tpu_custom_call.1} parent=1 // pred_check_branch
      %506 = sbr.rel (0) target = $region61
    $region60: #{tpu_custom_call.1} parent=1 // pred_region
      %s508 = ssub.s32 128, 128
      %509 = vsyncadd [#allocation4], %s508
      %s511 = sshll.u32 [#allocation11], 4
      %s512 = int_to_ptr.vmem [resolvable:$true] %s511
      %514 = dma.vmem_to_hbm [thread:$0]  %s512, 128, %s9, [#allocation4]
    $region61: #{tpu_custom_call.1} parent=1 // pred_fallthru
      _
    // Predicated region
    $region62: #{tpu_custom_call.1} parent=1 // pred_check
      _
    $region63: #{tpu_custom_call.1} parent=1 // pred_check_branch
      %516 = sbr.rel (0) target = $region65
    $region64: #{tpu_custom_call.1} parent=1 // pred_region
      %517 = dma.done [#allocation4], 128
    $region65: #{tpu_custom_call.1} parent=1 // pred_fallthru
      _
    %518 = vsyncpa [#allocation3], 1
    %519 = vsyncpa [#allocation6], 1
    %520 = vsyncpa [#allocation9], 1
    %521 = vsyncpa [#allocation4], 1

</llo_original>
